<compile_context>
chip_gen: v7x
topology: tpu7x:2x2x1
jax: 0.10.0
libtpu: 0.0.40
codegen_flags: <defaults>
</compile_context>

<pallas_src>
import functools
import math

import jax
import jax.numpy as jnp
from jax.experimental import pallas as pl
from jax.experimental.pallas import tpu as pltpu


def _round_up(x, m):
    return ((x + m - 1) // m) * m


# ----------------------------- Linear: x @ W + b -----------------------------

def _linear_kernel(x_ref, w_ref, b_ref, o_ref, acc_ref):
    @pl.when(pl.program_id(2) == 0)
    def _():
        acc_ref[...] = jnp.zeros(acc_ref.shape, acc_ref.dtype)

    acc_ref[...] += jnp.dot(x_ref[...], w_ref[...], preferred_element_type=jnp.float32)

    @pl.when(pl.program_id(2) == pl.num_programs(2) - 1)
    def _():
        o_ref[...] = (acc_ref[...] + b_ref[...].astype(jnp.float32)).astype(o_ref.dtype)


def linear(x2, w, b, *, tm=256, tn=256, tk=512):
    """x2: (M, K) @ w: (K, Nout) + b: (Nout,) -> (M, Nout). Tiled over (M, Nout, K)."""
    M, K = x2.shape
    Kw, Nout = w.shape
    assert Kw == K and b.shape == (Nout,)

    # M tile: minimize padding waste (don't round M all the way up to tm).
    n_m = max(1, math.ceil(M / tm))
    tm_eff = _round_up(math.ceil(M / n_m), 8)
    M_pad = _round_up(M, tm_eff)

    # N tile: full width if it fits, else lane/MXU-friendly 256-wide blocks.
    if Nout <= tn:
        tn_eff, N_pad = Nout, Nout
    else:
        tn_eff, N_pad = tn, _round_up(Nout, tn)

    # K tile: full depth if it fits, else 512-deep blocks accumulated in f32 scratch.
    if K <= tk:
        tk_eff, K_pad = K, K
    else:
        tk_eff, K_pad = tk, _round_up(K, tk)

    if (M_pad, K_pad) != (M, K):
        x2 = jnp.pad(x2, ((0, M_pad - M), (0, K_pad - K)))
    if (K_pad, N_pad) != (K, Nout):
        w = jnp.pad(w, ((0, K_pad - K), (0, N_pad - Nout)))
    b2 = b.reshape(1, Nout)
    if N_pad != Nout:
        b2 = jnp.pad(b2, ((0, 0), (0, N_pad - Nout)))

    grid = (M_pad // tm_eff, N_pad // tn_eff, K_pad // tk_eff)
    out = pl.pallas_call(
        _linear_kernel,
        out_shape=jax.ShapeDtypeStruct((M_pad, N_pad), x2.dtype),
        grid_spec=pltpu.PrefetchScalarGridSpec(
            num_scalar_prefetch=0,
            grid=grid,
            in_specs=[
                pl.BlockSpec((tm_eff, tk_eff), lambda i, j, k: (i, k)),   # x tile
                pl.BlockSpec((tk_eff, tn_eff), lambda i, j, k: (k, j)),   # W tile
                pl.BlockSpec((1, tn_eff), lambda i, j, k: (0, j)),        # bias tile
            ],
            out_specs=pl.BlockSpec((tm_eff, tn_eff), lambda i, j, k: (i, j)),
            scratch_shapes=[pltpu.VMEM((tm_eff, tn_eff), jnp.float32)],
        ),
        compiler_params=pltpu.CompilerParams(
            dimension_semantics=("parallel", "parallel", "arbitrary")),
        cost_estimate=pl.CostEstimate(
            flops=int(2 * M_pad * K_pad * N_pad),
            transcendentals=0,
            bytes_accessed=int(4 * (M_pad * K_pad * (N_pad // tn_eff)
                                    + K_pad * N_pad * (M_pad // tm_eff)
                                    + M_pad * N_pad))),
    )(x2, w, b2)
    return out[:M, :Nout]


# --------------------------- Fused flash attention ---------------------------

_NEG_INF = -1e30  # large-negative instead of -inf: avoids inf-inf NaNs on padded tiles


def _flash_kernel(q_ref, k_ref, v_ref, o_ref, m_sc, l_sc, acc_sc, *,
                  scale, hp, head_dim, kv_len, tk, need_mask):
    kv_i = pl.program_id(3)

    @pl.when(kv_i == 0)
    def _():
        m_sc[...] = jnp.full(m_sc.shape, _NEG_INF, m_sc.dtype)
        l_sc[...] = jnp.zeros(l_sc.shape, l_sc.dtype)
        acc_sc[...] = jnp.zeros(acc_sc.shape, acc_sc.dtype)

    q = q_ref[0] * scale        # (tq, hp*Dh) -- softmax scale folded into q once per tile
    k = k_ref[0]                # (tk, hp*Dh)
    v = v_ref[0]                # (tk, hp*Dh)

    if need_mask:               # static: only emitted when sequence padding exists
        kv_pos = kv_i * tk + jax.lax.broadcasted_iota(jnp.int32, (q.shape[0], tk), 1)
        col_valid = kv_pos < kv_len

    for h in range(hp):         # static per-head loop (heads packed along the lane dim)
        lo, hi = h * head_dim, (h + 1) * head_dim
        qh, kh, vh = q[:, lo:hi], k[:, lo:hi], v[:, lo:hi]

        # QK^T contracting the last axes of both operands (no k transpose / XLU copy).
        s = jax.lax.dot_general(qh, kh, (((1,), (1,)), ((), ())),
                                preferred_element_type=jnp.float32)   # (tq, tk)
        if need_mask:
            s = jnp.where(col_valid, s, _NEG_INF)

        m_prev = m_sc[h]                                              # (tq, 1)
        m_new = jnp.maximum(m_prev, jnp.max(s, axis=-1, keepdims=True))
        alpha = jnp.exp(m_prev - m_new)
        p = jnp.exp(s - m_new)
        if need_mask:
            p = jnp.where(col_valid, p, 0.0)   # fully-masked kv tiles cannot pollute l/acc

        l_sc[h] = alpha * l_sc[h] + jnp.sum(p, axis=-1, keepdims=True)
        acc_sc[h] = alpha * acc_sc[h] + jnp.dot(
            p.astype(vh.dtype), vh, preferred_element_type=jnp.float32)
        m_sc[h] = m_new

    @pl.when(kv_i == pl.num_programs(3) - 1)
    def _():
        outs = [acc_sc[h] * pl.reciprocal(l_sc[h], approx=True) for h in range(hp)]
        o_ref[0] = jnp.concatenate(outs, axis=-1).astype(o_ref.dtype)   # single lane-dense store


def flash_attention_fused(qkv, *, num_heads, head_dim, scale, tq=256, tk=256):
    """qkv: (B, N, 3*H*Dh) laid out as [q | k | v] x H x Dh (the qkv Linear output).
    Returns softmax(q k^T * scale) v with shape (B, N, H*Dh), head-major along the last dim
    (exactly the layout the output projection expects)."""
    B, N, C3 = qkv.shape
    H, Dh = num_heads, head_dim
    assert C3 == 3 * H * Dh

    # Heads per block so the last block dim (hp*Dh) is a multiple of 128 (lane-dense).
    hp = None
    for cand in range(1, H + 1):
        if H % cand == 0 and (cand * Dh) % 128 == 0:
            hp = cand
            break
    assert hp is not None, "num_heads * head_dim must be a multiple of 128"
    HG = H // hp
    hpD = hp * Dh

    # Decoupled q / kv tiles; clamp both to a single tile for small N.
    if _round_up(N, 8) <= min(tq, tk):
        tq_eff = tk_eff = _round_up(N, 8)
    else:
        tq_eff, tk_eff = tq, tk
    N_pad = _round_up(N, max(tq_eff, tk_eff))
    assert N_pad % tq_eff == 0 and N_pad % tk_eff == 0
    need_mask = N_pad != N
    if need_mask:
        qkv = jnp.pad(qkv, ((0, 0), (0, N_pad - N), (0, 0)))

    n_q = N_pad // tq_eff
    n_k = N_pad // tk_eff
    kernel = functools.partial(_flash_kernel, scale=scale, hp=hp, head_dim=Dh,
                               kv_len=N, tk=tk_eff, need_mask=need_mask)
    out = pl.pallas_call(
        kernel,
        out_shape=jax.ShapeDtypeStruct((B, N_pad, H * Dh), qkv.dtype),
        grid_spec=pltpu.PrefetchScalarGridSpec(
            num_scalar_prefetch=0,
            grid=(B, HG, n_q, n_k),
            in_specs=[
                pl.BlockSpec((1, tq_eff, hpD), lambda b, g, qi, ki: (b, qi, g)),           # q
                pl.BlockSpec((1, tk_eff, hpD), lambda b, g, qi, ki: (b, ki, HG + g)),      # k
                pl.BlockSpec((1, tk_eff, hpD), lambda b, g, qi, ki: (b, ki, 2 * HG + g)),  # v
            ],
            out_specs=pl.BlockSpec((1, tq_eff, hpD), lambda b, g, qi, ki: (b, qi, g)),
            scratch_shapes=[
                pltpu.VMEM((hp, tq_eff, 1), jnp.float32),    # running max per head
                pltpu.VMEM((hp, tq_eff, 1), jnp.float32),    # running denom per head
                pltpu.VMEM((hp, tq_eff, Dh), jnp.float32),   # output accumulator per head
            ],
        ),
        compiler_params=pltpu.CompilerParams(
            dimension_semantics=("parallel", "parallel", "parallel", "arbitrary")),
        cost_estimate=pl.CostEstimate(
            flops=int(4 * B * H * N_pad * N_pad * Dh),
            transcendentals=int(B * H * N_pad * N_pad),
            bytes_accessed=int(4 * B * H * Dh * (2 * N_pad + 2 * N_pad * n_q))),
    )(qkv, qkv, qkv)
    return out[:, :N, :]


# ------------------------------ Full forward pass ------------------------------

def attention_forward(x, params, *, num_heads, head_dim, tq=256, tk=256):
    """Equivalent of the PyTorch Attention.forward (qkv_bias=False, qk_norm=False, p=0.0)."""
    B, N, C = x.shape
    H, Dh = num_heads, head_dim
    M = B * N
    wqkv, bqkv, wproj, bproj = params

    # qkv projection; output layout is (B, N, [q|k|v] x H x Dh) — consumed in place below.
    qkv = linear(x.reshape(M, C), wqkv, bqkv).reshape(B, N, 3 * H * Dh)

    # q_norm / k_norm are nn.Identity; attn_drop p=0.0 -> identity.
    o = flash_attention_fused(qkv, num_heads=H, head_dim=Dh, scale=Dh ** (-0.5),
                              tq=tq, tk=tk)                          # (B, N, H*Dh)

    # output projection; proj_drop p=0.0 -> identity.
    out = linear(o.reshape(M, H * Dh), wproj, bproj)                 # (M, C)
    return out.reshape(B, N, C)


def init_params(key, dim, num_heads, head_dim, dtype=jnp.float32):
    """nn.Linear-style uniform init; weights stored (in, out) for row-major matmul."""
    k1, k2, k3 = jax.random.split(key, 3)
    qkv_out = 3 * num_heads * head_dim
    lim_qkv = 1.0 / float(dim) ** 0.5
    lim_proj = 1.0 / float(num_heads * head_dim) ** 0.5
    wqkv = jax.random.uniform(k1, (dim, qkv_out), dtype, -lim_qkv, lim_qkv)
    bqkv = jnp.zeros((qkv_out,), dtype)                       # qkv_bias=False
    wproj = jax.random.uniform(k2, (num_heads * head_dim, dim), dtype, -lim_proj, lim_proj)
    bproj = jax.random.uniform(k3, (dim,), dtype, -lim_proj, lim_proj)
    return wqkv, bqkv, wproj, bproj


if __name__ == "__main__":
    # Small shapes consistent with the module.
    B, N = 2, 16
    dim, num_heads = 64, 8
    head_dim = max(dim // num_heads, 32)   # = 32, matching the PyTorch module

    key = jax.random.PRNGKey(0)
    kx, kp = jax.random.split(key)
    x = jax.random.normal(kx, (B, N, dim), dtype=jnp.float32)
    params = init_params(kp, dim, num_heads, head_dim)

    out = attention_forward(x, params, num_heads=num_heads, head_dim=head_dim)
    out = jax.block_until_ready(out)

    # Pure-JAX reference (same semantics as the PyTorch forward).
    wqkv, bqkv, wproj, bproj = params
    qkv_r = (x @ wqkv + bqkv).reshape(B, N, 3, num_heads, head_dim).transpose(2, 0, 3, 1, 4)
    q_r, k_r, v_r = qkv_r[0], qkv_r[1], qkv_r[2]
    attn = jax.nn.softmax((q_r * head_dim ** (-0.5)) @ jnp.swapaxes(k_r, -1, -2), axis=-1)
    o_r = (attn @ v_r).transpose(0, 2, 1, 3).reshape(B, N, num_heads * head_dim)
    ref = o_r @ wproj + bproj

    assert out.shape == (B, N, dim)
    max_err = float(jnp.max(jnp.abs(out - ref)))
    # Tolerance slightly relaxed vs. exact: finalize uses pl.reciprocal(approx=True).
    assert jnp.allclose(out, ref, atol=2e-3, rtol=2e-3), max_err
    print("KERNEL_OK")
</pallas_src>

<mosaic_0001>
module attributes {stable_mosaic.version = 11 : i64} {
  func.func @_linear_kernel(%arg0: i32, %arg1: i32, %arg2: i32, %arg3: memref<32x64xf32, #tpu.memory_space<vmem>>, %arg4: memref<64x256xf32, #tpu.memory_space<vmem>>, %arg5: memref<1x256xf32, #tpu.memory_space<vmem>>, %arg6: memref<32x256xf32, #tpu.memory_space<vmem>>, %arg7: memref<32x256xf32, #tpu.memory_space<vmem>>) attributes {dimension_semantics = [#tpu.dimension_semantics<parallel>, #tpu.dimension_semantics<parallel>, #tpu.dimension_semantics<arbitrary>], iteration_bounds = array<i64: 1, 3, 1>, scalar_prefetch = 0 : i64, scratch_operands = 1 : i64, tpu.core_type = #tpu.core_type<tc>, window_params = [{transform_indices = @transform_0, window_bounds = array<i64: 32, 64>}, {transform_indices = @transform_1, window_bounds = array<i64: 64, 256>}, {transform_indices = @transform_2, window_bounds = array<i64: 1, 256>}, {transform_indices = @transform_3, window_bounds = array<i64: 32, 256>}]} {
    %c0_i32 = arith.constant 0 : i32
    %0 = arith.cmpi eq, %arg2, %c0_i32 : i32
    %1 = arith.extui %0 : i1 to i32
    %c0_i32_0 = arith.constant 0 : i32
    %2 = arith.cmpi ne, %1, %c0_i32_0 : i32
    scf.if %2 {
      %cst_10 = arith.constant 0.000000e+00 : f32
      %12 = vector.broadcast %cst_10 : f32 to vector<32x256xf32>
      %c0_11 = arith.constant 0 : index
      %c0_12 = arith.constant 0 : index
      %13 = vector.load %arg7[%c0_11, %c0_12] : memref<32x256xf32, #tpu.memory_space<vmem>>, vector<32x256xf32>
      tpu.vector_store %arg7[%c0_11, %c0_12], %12 {strides = array<i32>} : memref<32x256xf32, #tpu.memory_space<vmem>>, vector<32x256xf32>,
    } else {
    }
    %c0 = arith.constant 0 : index
    %c0_1 = arith.constant 0 : index
    %3 = vector.load %arg7[%c0, %c0_1] : memref<32x256xf32, #tpu.memory_space<vmem>>, vector<32x256xf32>
    %c0_2 = arith.constant 0 : index
    %c0_3 = arith.constant 0 : index
    %4 = vector.load %arg3[%c0_2, %c0_3] : memref<32x64xf32, #tpu.memory_space<vmem>>, vector<32x64xf32>
    %c0_4 = arith.constant 0 : index
    %c0_5 = arith.constant 0 : index
    %5 = vector.load %arg4[%c0_4, %c0_5] : memref<64x256xf32, #tpu.memory_space<vmem>>, vector<64x256xf32>
    %cst = arith.constant dense<0.000000e+00> : vector<32x256xf32>
    %6 = tpu.matmul %4, %5, %cst {dimension_numbers = #tpu.dot_dimension_numbers<[1], [0], [0], [1], [0, 0, 1, 1], [], []>} : vector<32x64xf32>, vector<64x256xf32>, vector<32x256xf32> -> vector<32x256xf32>
    %7 = arith.addf %3, %6 : vector<32x256xf32>
    %c0_6 = arith.constant 0 : index
    %c0_7 = arith.constant 0 : index
    %8 = vector.load %arg7[%c0_6, %c0_7] : memref<32x256xf32, #tpu.memory_space<vmem>>, vector<32x256xf32>
    tpu.vector_store %arg7[%c0_6, %c0_7], %7 {strides = array<i32>} : memref<32x256xf32, #tpu.memory_space<vmem>>, vector<32x256xf32>,
    %c0_i32_8 = arith.constant 0 : i32
    %9 = arith.cmpi eq, %arg2, %c0_i32_8 : i32
    %10 = arith.extui %9 : i1 to i32
    %c0_i32_9 = arith.constant 0 : i32
    %11 = arith.cmpi ne, %10, %c0_i32_9 : i32
    scf.if %11 {
      %c0_10 = arith.constant 0 : index
      %c0_11 = arith.constant 0 : index
      %12 = vector.load %arg7[%c0_10, %c0_11] : memref<32x256xf32, #tpu.memory_space<vmem>>, vector<32x256xf32>
      %c0_12 = arith.constant 0 : index
      %c0_13 = arith.constant 0 : index
      %13 = vector.load %arg5[%c0_12, %c0_13] : memref<1x256xf32, #tpu.memory_space<vmem>>, vector<1x256xf32>
      %14 = vector.broadcast %13 : vector<1x256xf32> to vector<32x256xf32>
      %15 = arith.addf %12, %14 : vector<32x256xf32>
      %c0_14 = arith.constant 0 : index
      %c0_15 = arith.constant 0 : index
      %16 = vector.load %arg6[%c0_14, %c0_15] : memref<32x256xf32, #tpu.memory_space<vmem>>, vector<32x256xf32>
      tpu.vector_store %arg6[%c0_14, %c0_15], %15 {strides = array<i32>} : memref<32x256xf32, #tpu.memory_space<vmem>>, vector<32x256xf32>,
    } else {
    }
    return
  }
  func.func @transform_0(%arg0: i32, %arg1: i32, %arg2: i32) -> (i32, i32) {
    %c0_i32 = arith.constant 0 : i32
    return %arg0, %arg2 : i32, i32
  }
  func.func @transform_1(%arg0: i32, %arg1: i32, %arg2: i32) -> (i32, i32) {
    %c0_i32 = arith.constant 0 : i32
    return %arg2, %arg1 : i32, i32
  }
  func.func @transform_2(%arg0: i32, %arg1: i32, %arg2: i32) -> (i32, i32) {
    %c0_i32 = arith.constant 0 : i32
    %c0_i32_0 = arith.constant 0 : i32
    return %c0_i32, %arg1 : i32, i32
  }
  func.func @transform_3(%arg0: i32, %arg1: i32, %arg2: i32) -> (i32, i32) {
    %c0_i32 = arith.constant 0 : i32
    return %arg0, %arg1 : i32, i32
  }
}

</mosaic_0001>

<llo_original>
// kernel: tpu_custom_call.1
$region0: #{tpu_custom_call.1}
  #allocation0 [shape = 'u32[]', space=smem, size = 0x4, offset = 0x4, fixed_abs, tag = 'smem constant byte address 0x4 - core index']
  #allocation1 [shape = 'u32[144,128]{1,0:T(1,128)}', space=vmem, size = 0x12000, scoped, tag = 'internal scratch']
  #allocation2 [shape = 'f32[32,256]{1,0:T(8,128)}', space=vmem, size = 0x8000, scoped, tag = 'scratch operand']
  %s0 = inlined_call_operand.hbm [shape: f32[32,64], index: 0, kind: input, shape index: {}]
  %s1 = inlined_call_operand.hbm [shape: f32[64,768], index: 1, kind: input, shape index: {}]
  %s2 = inlined_call_operand.vmem [shape: f32[1,768], index: 2, kind: input, shape index: {}]
  %s3 = inlined_call_operand.hbm [shape: f32[32,768], index: 3, kind: output, shape index: {}]
  %s4 = sld [smem:[#allocation0]]
  $region61: #{tpu_custom_call.1} parent=0
    _
  %s6 = ssub.s32 1, %s4
  %s7 = scalar_select 0, %s6, %s4
  $region1: #{tpu_custom_call.1} parent=0
    #allocation3 [shape = 'u8[16384]{0}', space=vmem, size = 0x4000, scoped, tag = 'input window, operand 0, single buffered']
    #allocation4 [shape = 's32[2]{0}', space=sflag, size = 0x8, scoped, tag = 'scoped memory for tpu_custom_call.1']
    #allocation5 [shape = 's32[2]{0}', space=sflag, size = 0x8, scoped, tag = 'scoped memory for tpu_custom_call.1']
    #allocation6 [shape = 'u8[131072]{0}', space=vmem, size = 0x20000, scoped, tag = 'input window, operand 1']
    #allocation7 [shape = 's32[2]{0}', space=sflag, size = 0x8, scoped, tag = 'scoped memory for tpu_custom_call.1']
    #allocation8 [shape = 'u8[65536]{0}', space=vmem, size = 0x10000, scoped, tag = 'output window, operand 0']
    %8 = vsyncpa [#allocation4], 0
    %9 = vsyncpa [#allocation7], 0
    %s10 = scalar_lea.sflag [#allocation7], 1
    %11 = vsyncpa %s10, 0
    %12 = vsyncpa [#allocation5], 0
    %s13 = scalar_lea.sflag [#allocation5], 1
    %14 = vsyncpa %s13, 0
    loop: start=0, step=1, limit=5
    $region2: #{tpu_custom_call.1} parent=1 // loop_pre_header
      _
    $region3: #{tpu_custom_call.1} parent=1 // loop_header
      %s16 = sphi 0, %s20
      %p17 = scmp.ge.s32.totalorder %s16, 5
      %s23 = sphi 0, %s42
      %s24 = sphi 0, %s38
      %s25 = sphi 0, %s34
      %s26 = sphi 0, %s23
      %s27 = sphi 0, %s24
      %s28 = sphi 0, %s25
      %s29 = sphi 0, %s26
      %s30 = sphi 0, %s27
      %s31 = sphi 0, %s28
      %s47 = sphi 0, %s49
      %s50 = sphi 0, %s47
      %s51 = sphi 0, %s50
      %s67 = sphi 0, %s51
      %s75 = sphi 0, %s77
      %s78 = sphi 0, %s75
      %s79 = sphi 0, %s78
      %s95 = sphi 0, %s79
      %s101 = sphi 0, %s103
      %s104 = sphi 0, %s101
      %s105 = sphi 0, %s104
      %s121 = sphi 0, %s105
      %s129 = sphi 0, %s131
      %s132 = sphi 0, %s129
      %s133 = sphi 0, %s132
      %s149 = sphi 0, %s133
    $region4: #{tpu_custom_call.1} parent=1 // loop_header_branch
      %19 = sbr.rel (%p17) target = $region8
    $region5: #{tpu_custom_call.1} parent=1 // loop_body
      %s21 = ssub.s32 %s16, 1
      %s22 = ssub.s32 %s16, 2
      %s32 = sadd.s32 1, %s25
      %p33 = scmp.ge.s32.totalorder %s32, 1
      %s34 = scalar_select %p33, 0, %s32
      %s35 = sadd.s32 1, %s24
      %s36 = scalar_select %p33, %s35, %s24
      %p37 = scmp.ge.s32.totalorder %s36, 3
      %s38 = scalar_select %p37, 0, %s36
      %s39 = sadd.s32 1, %s23
      %s40 = scalar_select %p37, %s39, %s23
      %p41 = scmp.ge.s32.totalorder %s40, 1
      %s42 = scalar_select %p41, 0, %s40
      %s43 = ssub.s32 %s23, %s42
      %s44 = ssub.s32 %s25, %s34
      %s45 = sor.u32 %s43, %s44
      %p46 = scmp.eq.s32.totalorder %s45, 0
      %s48 = sadd.s32 %s47, 1
      %s49 = scalar_select %p46, %s47, %s48
      %p52 = pneg %p46
      %p53 = scmp.eq.s32.totalorder %s16, 2
      %p54 = por %p52, %p53
      %p55 = scmp.ne.s32.totalorder %s47, %s50
      %p56 = scmp.eq.s32.totalorder %s16, 0
      %p57 = por %p55, %p56
      %p58 = scmp.ne.s32.totalorder %s47, %s50
      %p59 = scmp.eq.s32.totalorder %s21, 2
      %p60 = por %p58, %p59
      %p61 = scmp.ne.s32.totalorder %s50, %s51
      %p62 = scmp.eq.s32.totalorder %s21, 0
      %p63 = por %p61, %p62
      %p64 = scmp.ne.s32.totalorder %s50, %s51
      %p65 = scmp.eq.s32.totalorder %s22, 2
      %p66 = por %p64, %p65
      %p68 = scmp.ne.s32.totalorder %s51, %s67
      %p69 = scmp.eq.s32.totalorder %s22, 0
      %p70 = por %p68, %p69
      %s71 = ssub.s32 %s25, %s34
      %s72 = ssub.s32 %s24, %s38
      %s73 = sor.u32 %s71, %s72
      %p74 = scmp.eq.s32.totalorder %s73, 0
      %s76 = sadd.s32 %s75, 1
      %s77 = scalar_select %p74, %s75, %s76
      %p80 = pneg %p74
      %p81 = scmp.eq.s32.totalorder %s16, 2
      %p82 = por %p80, %p81
      %p83 = scmp.ne.s32.totalorder %s75, %s78
      %p84 = scmp.eq.s32.totalorder %s16, 0
      %p85 = por %p83, %p84
      %p86 = scmp.ne.s32.totalorder %s75, %s78
      %p87 = scmp.eq.s32.totalorder %s21, 2
      %p88 = por %p86, %p87
      %p89 = scmp.ne.s32.totalorder %s78, %s79
      %p90 = scmp.eq.s32.totalorder %s21, 0
      %p91 = por %p89, %p90
      %p92 = scmp.ne.s32.totalorder %s78, %s79
      %p93 = scmp.eq.s32.totalorder %s22, 2
      %p94 = por %p92, %p93
      %p96 = scmp.ne.s32.totalorder %s79, %s95
      %p97 = scmp.eq.s32.totalorder %s22, 0
      %p98 = por %p96, %p97
      %s99 = ssub.s32 %s24, %s38
      %p100 = scmp.eq.s32.totalorder %s99, 0
      %s102 = sadd.s32 %s101, 1
      %s103 = scalar_select %p100, %s101, %s102
      %p106 = pneg %p100
      %p107 = scmp.eq.s32.totalorder %s16, 2
      %p108 = por %p106, %p107
      %p109 = scmp.ne.s32.totalorder %s101, %s104
      %p110 = scmp.eq.s32.totalorder %s16, 0
      %p111 = por %p109, %p110
      %p112 = scmp.ne.s32.totalorder %s101, %s104
      %p113 = scmp.eq.s32.totalorder %s21, 2
      %p114 = por %p112, %p113
      %p115 = scmp.ne.s32.totalorder %s104, %s105
      %p116 = scmp.eq.s32.totalorder %s21, 0
      %p117 = por %p115, %p116
      %p118 = scmp.ne.s32.totalorder %s104, %s105
      %p119 = scmp.eq.s32.totalorder %s22, 2
      %p120 = por %p118, %p119
      %p122 = scmp.ne.s32.totalorder %s105, %s121
      %p123 = scmp.eq.s32.totalorder %s22, 0
      %p124 = por %p122, %p123
      %s125 = ssub.s32 %s23, %s42
      %s126 = ssub.s32 %s24, %s38
      %s127 = sor.u32 %s125, %s126
      %p128 = scmp.eq.s32.totalorder %s127, 0
      %s130 = sadd.s32 %s129, 1
      %s131 = scalar_select %p128, %s129, %s130
      %p134 = pneg %p128
      %p135 = scmp.eq.s32.totalorder %s16, 2
      %p136 = por %p134, %p135
      %p137 = scmp.ne.s32.totalorder %s129, %s132
      %p138 = scmp.eq.s32.totalorder %s16, 0
      %p139 = por %p137, %p138
      %p140 = scmp.ne.s32.totalorder %s129, %s132
      %p141 = scmp.eq.s32.totalorder %s21, 2
      %p142 = por %p140, %p141
      %p143 = scmp.ne.s32.totalorder %s132, %s133
      %p144 = scmp.eq.s32.totalorder %s21, 0
      %p145 = por %p143, %p144
      %p146 = scmp.ne.s32.totalorder %s132, %s133
      %p147 = scmp.eq.s32.totalorder %s22, 2
      %p148 = por %p146, %p147
      %p150 = scmp.ne.s32.totalorder %s133, %s149
      %p151 = scmp.eq.s32.totalorder %s22, 0
      %p152 = por %p150, %p151
      %p153 = scmp.le.s32.totalorder 1, %s16
      %p154 = scmp.lt.s32.totalorder %s16, 4
      %p155 = pnand %p153, %p154
      %p156 = pneg %p155
      // Predicated region
      $region9: #{tpu_custom_call.1} parent=5 // pred_check
        _
      $region10: #{tpu_custom_call.1} parent=5 // pred_check_branch
        %158 = sbr.rel (%p155) target = $region12
      $region11: #{tpu_custom_call.1} parent=5 // pred_region
        %s159 = ssub.s32 %s16, 1
        // Predicated region
        $region13: #{tpu_custom_call.1} parent=11 // pred_check
          %p160 = pneg %p63
        $region14: #{tpu_custom_call.1} parent=11 // pred_check_branch
          %162 = sbr.rel (%p160) target = $region16
        $region15: #{tpu_custom_call.1} parent=11 // pred_region
          %s163 = smul.u32 4, %s26
          %s165 = ssub.s32 512, 512
          %166 = vsyncadd [#allocation4], %s165
          %s167 = sadd.s32 %s28, %s163
          %s168 = smul.addr %s167, 128
          %s169 = scalar_lea.hbm %s0, %s168
          %s170 = sshll.u32 [#allocation3], 4
          %s171 = int_to_ptr.vmem [resolvable:$true] %s170
          %176 = dma.hbm_to_vmem [thread:$0]  %s169, 512, %s171, [#allocation4], 128, 128, 8
        $region16: #{tpu_custom_call.1} parent=11 // pred_fallthru
          _
      $region12: #{tpu_custom_call.1} parent=5 // pred_fallthru
        _
      %p177 = scmp.lt.s32.totalorder %s16, 3
      // Predicated region
      $region17: #{tpu_custom_call.1} parent=5 // pred_check
        %p178 = pneg %p177
      $region18: #{tpu_custom_call.1} parent=5 // pred_check_branch
        %180 = sbr.rel (%p178) target = $region20
      $region19: #{tpu_custom_call.1} parent=5 // pred_region
        // Predicated region
        $region21: #{tpu_custom_call.1} parent=19 // pred_check
          %p181 = pneg %p85
        $region22: #{tpu_custom_call.1} parent=19 // pred_check_branch
          %183 = sbr.rel (%p181) target = $region24
        $region23: #{tpu_custom_call.1} parent=19 // pred_region
          %s184 = sand.u32 %s75, 1
          %s185 = scalar_lea.sflag [#allocation7], %s184
          %s186 = sand.u32 %s75, 1
          %s187 = smul.addr %s186, 128
          %s188 = scalar_lea.vmem [#allocation6], %s187
          %s189 = smul.u32 8, %s25
          %s190 = smul.u32 2, %s24
          %s192 = ssub.s32 2048, 2048
          %193 = vsyncadd %s185, %s192
          %s194 = smul.addr %s189, 6
          %s195 = sadd.s32 %s190, %s194
          %s196 = smul.addr %s195, 128
          %s197 = scalar_lea.hbm %s1, %s196
          %s198 = sshll.u32 %s188, 4
          %s199 = int_to_ptr.vmem [resolvable:$true] %s198
          %204 = dma.hbm_to_vmem [thread:$0]  %s197, 2048, %s199, %s185, 768, 256, 16
        $region24: #{tpu_custom_call.1} parent=19 // pred_fallthru
          _
        // Predicated region
        $region25: #{tpu_custom_call.1} parent=19 // pred_check
          %p205 = pneg %p111
        $region26: #{tpu_custom_call.1} parent=19 // pred_check_branch
          %207 = sbr.rel (%p205) target = $region28
        $region27: #{tpu_custom_call.1} parent=19 // pred_region
          %s208 = smul.u32 2, %s24
          %p209 = scmp.lt.s32.totalorder %s208, 5
          %s210 = scalar_select %p209, %s208, 5
          %s211 = scalar_lea.vmem %s2, %s210
          %s212 = smul.u32 2, %s24
        $region28: #{tpu_custom_call.1} parent=19 // pred_fallthru
          _
      $region20: #{tpu_custom_call.1} parent=5 // pred_fallthru
        _
      %p213 = scmp.le.s32.totalorder 1, %s16
      %p214 = scmp.lt.s32.totalorder %s16, 4
      %p215 = pnand %p213, %p214
      %p216 = pneg %p215
      // Predicated region
      $region29: #{tpu_custom_call.1} parent=5 // pred_check
        _
      $region30: #{tpu_custom_call.1} parent=5 // pred_check_branch
        %218 = sbr.rel (%p215) target = $region32
      $region31: #{tpu_custom_call.1} parent=5 // pred_region
        %s219 = ssub.s32 %s16, 1
        // Predicated region
        $region33: #{tpu_custom_call.1} parent=31 // pred_check
          %p220 = pneg %p63
        $region34: #{tpu_custom_call.1} parent=31 // pred_check_branch
          %222 = sbr.rel (%p220) target = $region36
        $region35: #{tpu_custom_call.1} parent=31 // pred_region
          %223 = dma.done [#allocation4], 512
        $region36: #{tpu_custom_call.1} parent=31 // pred_fallthru
          _
        %s224 = sand.u32 %s78, 1
        %s225 = scalar_lea.sflag [#allocation7], %s224
        %s226 = sand.u32 %s78, 1
        %s227 = smul.addr %s226, 128
        %s228 = scalar_lea.vmem [#allocation6], %s227
        // Predicated region
        $region37: #{tpu_custom_call.1} parent=31 // pred_check
          %p229 = pneg %p91
        $region38: #{tpu_custom_call.1} parent=31 // pred_check_branch
          %231 = sbr.rel (%p229) target = $region40
        $region39: #{tpu_custom_call.1} parent=31 // pred_region
          %232 = dma.done %s225, 2048
        $region40: #{tpu_custom_call.1} parent=31 // pred_fallthru
          _
        %p233 = pneg %p63
        %p234 = pneg %p60
        %s235 = sand.u32 %s78, 1
        %s236 = scalar_lea.sflag [#allocation7], %s235
        %s237 = sand.u32 %s78, 1
        %s238 = smul.addr %s237, 128
        %s239 = scalar_lea.vmem [#allocation6], %s238
        %p240 = pneg %p91
        %p241 = pneg %p88
        %s242 = smul.u32 2, %s27
        %p243 = scmp.lt.s32.totalorder %s242, 5
        %s244 = scalar_select %p243, %s242, 5
        %s245 = scalar_lea.vmem %s2, %s244
        %p246 = pneg %p117
        %p247 = pneg %p114
        %p248 = pneg %p145
        %p249 = pneg %p142
        %s250 = sand.u32 %s132, 1
        %s251 = scalar_lea.sflag [#allocation5], %s250
        %s252 = sand.u32 %s132, 1
        %s253 = smul.addr %s252, 64
        %s254 = scalar_lea.vmem [#allocation8], %s253
        %s255 = smul.u32 4, %s26
        %s256 = smul.u32 8, %s28
        %s257 = smul.u32 2, %s27
        %s258 = smul.u32 2, %s27
        %p259 = scmp.lt.s32.totalorder %s258, 5
        %s260 = scalar_select %p259, %s258, 5
        %s261 = scalar_lea.vmem %s2, %s260
        %s262 = smul.u32 2, %s27
        %s263 = smul.u32 4, %s26
        %s264 = smul.u32 2, %s27
        %p265 = scmp.eq.s32.totalorder %s28, 0
        // Predicated region
        $region41: #{tpu_custom_call.1} parent=31 // pred_check
          %p266 = pneg %p265
        $region42: #{tpu_custom_call.1} parent=31 // pred_check_branch
          %268 = sbr.rel (%p266) target = $region44
        $region43: #{tpu_custom_call.1} parent=31 // pred_region
          %269 = vst [vmem:[#allocation2] sm:$0xff] 0.0
          %270 = vst [vmem:[#allocation2 + $0x8] sm:$0xff] 0.0
          %271 = vst [vmem:[#allocation2 + $0x10] sm:$0xff] 0.0
          %272 = vst [vmem:[#allocation2 + $0x18] sm:$0xff] 0.0
          %273 = vst [vmem:[#allocation2 + $0x20] sm:$0xff] 0.0
          %274 = vst [vmem:[#allocation2 + $0x28] sm:$0xff] 0.0
          %275 = vst [vmem:[#allocation2 + $0x30] sm:$0xff] 0.0
          %276 = vst [vmem:[#allocation2 + $0x38] sm:$0xff] 0.0
        $region44: #{tpu_custom_call.1} parent=31 // pred_fallthru
          _
        %v277 = vld [vmem:[#allocation2] sm:$0xff]
        %v278 = vld [vmem:[#allocation2 + $0x8] sm:$0xff]
        %v279 = vld [vmem:[#allocation2 + $0x10] sm:$0xff]
        %v280 = vld [vmem:[#allocation2 + $0x18] sm:$0xff]
        %v281 = vld [vmem:[#allocation2 + $0x20] sm:$0xff]
        %v282 = vld [vmem:[#allocation2 + $0x28] sm:$0xff]
        %v283 = vld [vmem:[#allocation2 + $0x30] sm:$0xff]
        %v284 = vld [vmem:[#allocation2 + $0x38] sm:$0xff]
        %v285 = vld [vmem:[#allocation3] sm:$0xff]
        %v286 = vld [vmem:[#allocation3 + $0x8] sm:$0xff]
        %v287 = vld [vmem:[#allocation3 + $0x10] sm:$0xff]
        %v288 = vld [vmem:[#allocation3 + $0x18] sm:$0xff]
        %v289 = vld [vmem:[%s228] sm:$0xff]
        %v290 = vld [vmem:[%s228 + $0x8] sm:$0xff]
        %v291 = vld [vmem:[%s228 + $0x10] sm:$0xff]
        %v292 = vld [vmem:[%s228 + $0x18] sm:$0xff]
        %v293 = vld [vmem:[%s228 + $0x20] sm:$0xff]
        %v294 = vld [vmem:[%s228 + $0x28] sm:$0xff]
        %v295 = vld [vmem:[%s228 + $0x30] sm:$0xff]
        %v296 = vld [vmem:[%s228 + $0x38] sm:$0xff]
        %v297 = vld [vmem:[%s228 + $0x40] sm:$0xff]
        %v298 = vld [vmem:[%s228 + $0x48] sm:$0xff]
        %v299 = vld [vmem:[%s228 + $0x50] sm:$0xff]
        %v300 = vld [vmem:[%s228 + $0x58] sm:$0xff]
        %v301 = vld [vmem:[%s228 + $0x60] sm:$0xff]
        %v302 = vld [vmem:[%s228 + $0x68] sm:$0xff]
        %v303 = vld [vmem:[%s228 + $0x70] sm:$0xff]
        %v304 = vld [vmem:[%s228 + $0x78] sm:$0xff]
        %vm305 = vcmask 523264
        %v307 = vsel %vm305, %v285, 0
        %v310 = vsel %vm305, %v286, 0
        %v313 = vsel %vm305, %v287, 0
        %v316 = vsel %vm305, %v288, 0
        %318 = vmatprep.subr.mxu0 %v290
        %319 = vmatpush1.msra.mxu0 %v289
        %320 = vmatprep.subr.mxu0 %v292
        %321 = vmatpush1.msra.mxu0 %v291
        %322 = vmatprep.subr.mxu0 %v294
        %323 = vmatpush1.msra.mxu0 %v293
        %324 = vmatprep.subr.mxu0 %v296
        %325 = vmatpush1.msra.mxu0 %v295
        %326 = vmatprep.subr.mxu0 %v298
        %327 = vmatpush1.msra.mxu0 %v297
        %328 = vmatprep.subr.mxu0 %v300
        %329 = vmatpush1.msra.mxu0 %v299
        %330 = vmatprep.subr.mxu0 %v302
        %331 = vmatpush1.msra.mxu0 %v301
        %332 = vmatprep.subr.mxu0 %v304
        %333 = vmatpush1.msra.mxu0 %v303
        %334 = vmatprep.subr.mxu0 0.0
        %335 = vmatpush1.msra.mxu0 0.0
        %336 = vmatprep.subr.mxu0 0.0
        %337 = vmatpush1.msra.mxu0 0.0
        %338 = vmatprep.subr.mxu0 0.0
        %339 = vmatpush1.msra.mxu0 0.0
        %340 = vmatprep.subr.mxu0 0.0
        %341 = vmatpush1.msra.mxu0 0.0
        %342 = vmatprep.subr.mxu0 0.0
        %343 = vmatpush1.msra.mxu0 0.0
        %344 = vmatprep.subr.mxu0 0.0
        %345 = vmatpush1.msra.mxu0 0.0
        %346 = vmatprep.subr.mxu0 0.0
        %347 = vmatpush1.msra.mxu0 0.0
        %348 = vmatprep.subr.mxu0 0.0
        %349 = vmatpush1.msra.mxu0 0.0
        %350 = vmatprep.subr.mxu0 0.0
        %351 = vmatpush1.msra.mxu0 0.0
        %352 = vmatprep.subr.mxu0 0.0
        %353 = vmatpush1.msra.mxu0 0.0
        %354 = vmatprep.subr.mxu0 0.0
        %355 = vmatpush1.msra.mxu0 0.0
        %356 = vmatprep.subr.mxu0 0.0
        %357 = vmatpush1.msra.mxu0 0.0
        %358 = vmatprep.subr.mxu0 0.0
        %359 = vmatpush1.msra.mxu0 0.0
        %360 = vmatprep.subr.mxu0 0.0
        %361 = vmatpush1.msra.mxu0 0.0
        %362 = vmatprep.subr.mxu0 0.0
        %363 = vmatpush1.msra.mxu0 0.0
        %364 = vmatprep.subr.mxu0 0.0
        %365 = vmatpush1.msra.mxu0 0.0
        %366 = vmatprep.subr.mxu0 0.0
        %367 = vmatpush1.msra.mxu0 0.0
        %368 = vmatprep.subr.mxu0 0.0
        %369 = vmatpush1.msra.mxu0 0.0
        %370 = vmatprep.subr.mxu0 0.0
        %371 = vmatpush1.msra.mxu0 0.0
        %372 = vmatprep.subr.mxu0 0.0
        %373 = vmatpush1.msra.mxu0 0.0
        %374 = vmatprep.subr.mxu0 0.0
        %375 = vmatpush1.msra.mxu0 0.0
        %376 = vmatprep.subr.mxu0 0.0
        %377 = vmatpush1.msra.mxu0 0.0
        %378 = vmatprep.subr.mxu0 0.0
        %379 = vmatpush1.msra.mxu0 0.0
        %380 = vmatprep.subr.mxu0 0.0
        %381 = vmatpush1.msra.mxu0 0.0
        %382 = vmatprep.mubr.f32.mxu0 0.0
        %383 = vmatmul.mubr.f32.gmra.mrb[0].mxu0 %v307
        %v384 = vpop.f32.mrb[0].mxu0
        %v385 = vadd.f32 0.0, %v384
        %v386 = vpop.f32.mrb[0].mxu0
        %v387 = vadd.f32 0.0, %v386
        %388 = vmatprep.mubr.f32.mxu0 0.0
        %389 = vmatmul.mubr.f32.gmra.mrb[0].mxu0 %v310
        %v390 = vpop.f32.mrb[0].mxu0
        %v391 = vadd.f32 0.0, %v390
        %v392 = vpop.f32.mrb[0].mxu0
        %v393 = vadd.f32 0.0, %v392
        %394 = vmatprep.mubr.f32.mxu0 0.0
        %395 = vmatmul.mubr.f32.gmra.mrb[0].mxu0 %v313
        %v396 = vpop.f32.mrb[0].mxu0
        %v397 = vadd.f32 0.0, %v396
        %v398 = vpop.f32.mrb[0].mxu0
        %v399 = vadd.f32 0.0, %v398
        %400 = vmatprep.mubr.f32.mxu0 0.0
        %401 = vmatmul.mubr.f32.gmra.mrb[0].mxu0 %v316
        %v402 = vpop.f32.mrb[0].mxu0
        %v403 = vadd.f32 0.0, %v402
        %v404 = vpop.f32.mrb[0].mxu0
        %v405 = vadd.f32 0.0, %v404
        %406 = vdwg.mxu0
        %v407 = vadd.f32 %v277, %v385
        %v408 = vadd.f32 %v278, %v387
        %v409 = vadd.f32 %v279, %v391
        %v410 = vadd.f32 %v280, %v393
        %v411 = vadd.f32 %v281, %v397
        %v412 = vadd.f32 %v282, %v399
        %v413 = vadd.f32 %v283, %v403
        %v414 = vadd.f32 %v284, %v405
        %415 = vst [vmem:[#allocation2] sm:$0xff] %v407
        %416 = vst [vmem:[#allocation2 + $0x8] sm:$0xff] %v408
        %417 = vst [vmem:[#allocation2 + $0x10] sm:$0xff] %v409
        %418 = vst [vmem:[#allocation2 + $0x18] sm:$0xff] %v410
        %419 = vst [vmem:[#allocation2 + $0x20] sm:$0xff] %v411
        %420 = vst [vmem:[#allocation2 + $0x28] sm:$0xff] %v412
        %421 = vst [vmem:[#allocation2 + $0x30] sm:$0xff] %v413
        %422 = vst [vmem:[#allocation2 + $0x38] sm:$0xff] %v414
        // Predicated region
        $region45: #{tpu_custom_call.1} parent=31 // pred_check
          %p423 = pneg %p265
        $region46: #{tpu_custom_call.1} parent=31 // pred_check_branch
          %425 = sbr.rel (%p423) target = $region48
        $region47: #{tpu_custom_call.1} parent=31 // pred_region
          %v426 = vld [vmem:[#allocation2] sm:$0xff]
          %v427 = vld [vmem:[#allocation2 + $0x8] sm:$0xff]
          %v428 = vld [vmem:[#allocation2 + $0x10] sm:$0xff]
          %v429 = vld [vmem:[#allocation2 + $0x18] sm:$0xff]
          %v430 = vld [vmem:[#allocation2 + $0x20] sm:$0xff]
          %v431 = vld [vmem:[#allocation2 + $0x28] sm:$0xff]
          %v432 = vld [vmem:[#allocation2 + $0x30] sm:$0xff]
          %v433 = vld [vmem:[#allocation2 + $0x38] sm:$0xff]
          %v434 = vld [vmem:[%s261] sm:$0x3]
          %v436 = vlaneseq
          %v437 = vshrl.u32 %v436, 7
          %v438 = vsub.s32 0, %v437
          %v439 = vrot.slane %v434, %v438
          %v440 = vlaneseq
          %v441 = vshrl.u32 %v440, 7
          %v442 = vsub.s32 1, %v441
          %v443 = vrot.slane %v434, %v442
          %v446 = vadd.f32 %v426, %v439
          %v447 = vadd.f32 %v427, %v443
          %v448 = vadd.f32 %v428, %v439
          %v449 = vadd.f32 %v429, %v443
          %v450 = vadd.f32 %v430, %v439
          %v451 = vadd.f32 %v431, %v443
          %v452 = vadd.f32 %v432, %v439
          %v453 = vadd.f32 %v433, %v443
          %454 = vst [vmem:[%s254] sm:$0xff] %v446
          %455 = vst [vmem:[%s254 + $0x8] sm:$0xff] %v447
          %456 = vst [vmem:[%s254 + $0x10] sm:$0xff] %v448
          %457 = vst [vmem:[%s254 + $0x18] sm:$0xff] %v449
          %458 = vst [vmem:[%s254 + $0x20] sm:$0xff] %v450
          %459 = vst [vmem:[%s254 + $0x28] sm:$0xff] %v451
          %460 = vst [vmem:[%s254 + $0x30] sm:$0xff] %v452
          %461 = vst [vmem:[%s254 + $0x38] sm:$0xff] %v453
        $region48: #{tpu_custom_call.1} parent=31 // pred_fallthru
          _
        %s462 = sand.u32 %s132, 1
        %s463 = scalar_lea.sflag [#allocation5], %s462
        %s464 = sand.u32 %s132, 1
        %s465 = smul.addr %s464, 64
        %s466 = scalar_lea.vmem [#allocation8], %s465
        // Predicated region
        $region49: #{tpu_custom_call.1} parent=31 // pred_check
          %p467 = pneg %p142
        $region50: #{tpu_custom_call.1} parent=31 // pred_check_branch
          %469 = sbr.rel (%p467) target = $region52
        $region51: #{tpu_custom_call.1} parent=31 // pred_region
          %s470 = smul.u32 4, %s26
          %s471 = smul.u32 2, %s27
          %s473 = ssub.s32 1024, 1024
          %474 = vsyncadd %s463, %s473
          %s475 = smul.addr %s470, 6
          %s476 = sadd.s32 %s471, %s475
          %s477 = smul.addr %s476, 128
          %s478 = scalar_lea.hbm %s3, %s477
          %s479 = sshll.u32 %s466, 4
          %s480 = int_to_ptr.vmem [resolvable:$true] %s479
          %485 = dma.vmem_to_hbm [thread:$0]  %s480, 1024, %s478, %s463, 256, 768, 16
        $region52: #{tpu_custom_call.1} parent=31 // pred_fallthru
          _
      $region32: #{tpu_custom_call.1} parent=5 // pred_fallthru
        _
      %p486 = scmp.le.s32.totalorder 2, %s16
      // Predicated region
      $region53: #{tpu_custom_call.1} parent=5 // pred_check
        %p487 = pneg %p486
      $region54: #{tpu_custom_call.1} parent=5 // pred_check_branch
        %489 = sbr.rel (%p487) target = $region56
      $region55: #{tpu_custom_call.1} parent=5 // pred_region
        %s490 = ssub.s32 %s16, 2
        // Predicated region
        $region57: #{tpu_custom_call.1} parent=55 // pred_check
          %p491 = pneg %p148
        $region58: #{tpu_custom_call.1} parent=55 // pred_check_branch
          %493 = sbr.rel (%p491) target = $region60
        $region59: #{tpu_custom_call.1} parent=55 // pred_region
          %s494 = sand.u32 %s133, 1
          %s495 = scalar_lea.sflag [#allocation5], %s494
          %s496 = sand.u32 %s133, 1
          %s497 = smul.addr %s496, 64
          %s498 = scalar_lea.vmem [#allocation8], %s497
          %499 = dma.done %s495, 1024
        $region60: #{tpu_custom_call.1} parent=55 // pred_fallthru
          _
      $region56: #{tpu_custom_call.1} parent=5 // pred_fallthru
        _
    $region6: #{tpu_custom_call.1} parent=1 // loop_footer
      %s20 = sadd.s32 1, %s16
    $region7: #{tpu_custom_call.1} parent=1 // loop_footer_branch
      %15 = sbr.rel target = $region3
    $region8: #{tpu_custom_call.1} parent=1 // loop_exit
      _
    %500 = vsyncpa [#allocation4], 1
    %s501 = scalar_lea.sflag [#allocation4], 1
    %502 = vsyncpa %s501, 1
    %503 = vsyncpa [#allocation7], 1
    %s504 = scalar_lea.sflag [#allocation7], 1
    %505 = vsyncpa %s504, 1
    %506 = vsyncpa [#allocation5], 1
    %s507 = scalar_lea.sflag [#allocation5], 1
    %508 = vsyncpa %s507, 1

</llo_original>
